<compile_context>
chip_gen: v7x
topology: tpu7x:2x2x1
jax: 0.10.0
libtpu: 0.0.40
codegen_flags: <defaults>
</compile_context>

<pallas_src>
import functools

import jax
import jax.numpy as jnp
from jax.experimental import pallas as pl
from jax.experimental.pallas import tpu as pltpu


_SUBLANE = 8
_LANE = 128
# Conservative per-kernel VMEM usage budget that fits v5e / v6e / v7x.
_VMEM_BUDGET = 40 * 1024 * 1024


def _round_up(x: int, m: int) -> int:
    return ((x + m - 1) // m) * m


def normal_head_kernel(x_ref, w1_ref, w2_ref, b_ref, o_ref, h_ref, *,
                       num_k, compute_dtype):
    """One (TILE_B, C_pad) output tile of  x @ W1 @ W2 + b_eff."""
    x = x_ref[...]
    if compute_dtype is not None and x.dtype != compute_dtype:
        # In-kernel cast: full bf16 MXU rate with zero extra HBM traffic
        # (a wrapper-side astype would be a separate read+write pass over x).
        x = x.astype(compute_dtype)

    partial_h = jnp.dot(x, w1_ref[...], preferred_element_type=jnp.float32)

    if num_k == 1:
        # Fused fast path: stage the hidden in VMEM scratch (compute dtype when
        # bf16 -> halves the scratch store/load) and finish immediately.
        h_ref[...] = partial_h.astype(h_ref.dtype)
        out = jnp.dot(h_ref[...], w2_ref[...],
                      preferred_element_type=jnp.float32) + b_ref[...]
        o_ref[...] = out.astype(o_ref.dtype)
    else:
        # K-tiled path (large D_in): accumulate the hidden in f32 scratch across
        # the innermost "arbitrary" K axis; finalize on the last K step.
        k = pl.program_id(1)

        @pl.when(k == 0)
        def _():
            h_ref[...] = partial_h

        @pl.when(k > 0)
        def _():
            h_ref[...] += partial_h

        @pl.when(k == num_k - 1)
        def _():
            out = jnp.dot(h_ref[...].astype(w2_ref.dtype), w2_ref[...],
                          preferred_element_type=jnp.float32) + b_ref[...]
            o_ref[...] = out.astype(o_ref.dtype)


def prepare_normal_head_params(w1, b1, w2, b2, *, compute_dtype=None):
    """One-time weight prep — hoist out of the per-call path for long-lived params.

    * Pads the class dim of W2 / b2 up to a multiple of 128 (lane-dense output).
    * Folds b1 into the output bias (exact, in f32):
        (x@W1 + b1)@W2 + b2 == x@W1@W2 + (b1@W2 + b2)
    * Optionally casts W1 / W2 to `compute_dtype` (e.g. bf16 on v5e/v6e/v7x).
    """
    d_in, hidden = w1.shape
    assert w2.shape[0] == hidden
    classes = w2.shape[1]
    c_pad = _round_up(classes, _LANE)

    w2_p = jnp.zeros((hidden, c_pad), w2.dtype).at[:, :classes].set(w2)
    b2_p = jnp.zeros((c_pad,), jnp.float32).at[:classes].set(b2.astype(jnp.float32))
    b_eff = (b1.astype(jnp.float32) @ w2_p.astype(jnp.float32) + b2_p)
    b_eff = b_eff.reshape(1, c_pad)

    if compute_dtype is not None:
        w1 = w1.astype(compute_dtype)
        w2_p = w2_p.astype(compute_dtype)

    return {"w1": w1, "w2": w2_p, "b_eff": b_eff,
            "classes": classes, "compute_dtype": compute_dtype}


def _vmem_usage(tile_b, tile_k, hidden, c_pad, num_k,
                x_itemsize, w_itemsize, out_itemsize, h_itemsize):
    x_buf = 2 * tile_b * tile_k * x_itemsize                       # double-buffered
    w1_buf = (2 if num_k > 1 else 1) * tile_k * hidden * w_itemsize
    w2_buf = hidden * c_pad * w_itemsize                           # Buffered(1)
    b_buf = 2 * _SUBLANE * c_pad * 4
    o_buf = 2 * tile_b * c_pad * out_itemsize
    h_buf = tile_b * hidden * h_itemsize
    return x_buf + w1_buf + w2_buf + b_buf + o_buf + h_buf


def normal_head_apply(x, params, *, tile_b=512, tile_k=None):
    B, d_in = x.shape
    w1, w2, b_eff = params["w1"], params["w2"], params["b_eff"]
    classes, compute_dtype = params["classes"], params["compute_dtype"]
    assert w1.shape[0] == d_in
    hidden = w1.shape[1]
    c_pad = w2.shape[1]

    x_itemsize = jnp.dtype(x.dtype).itemsize
    w_itemsize = jnp.dtype(w1.dtype).itemsize
    out_itemsize = x_itemsize

    # ---- Batch tile: multiple of 8 sublanes; ensure >= 2 grid steps so the
    # "parallel" batch axis actually shards across both TensorCores on v7x.
    tile_b = max(_SUBLANE,
                 _round_up(min(tile_b, _round_up(B, _SUBLANE)), _SUBLANE))
    if pl.cdiv(B, tile_b) < 2 and B > 2 * _SUBLANE:
        tile_b = _round_up(pl.cdiv(B, 2), _SUBLANE)

    def usage(tb, tk, nk, h_item):
        return _vmem_usage(tb, tk, hidden, c_pad, nk,
                           x_itemsize, w_itemsize, out_itemsize, h_item)

    # ---- K (D_in) tile: keep the whole contraction resident unless the buffer
    # set would blow the VMEM budget; then pick a 128-multiple divisor of D_in.
    if tile_k is None:
        tile_k = d_in
        h_item0 = (jnp.dtype(compute_dtype).itemsize
                   if compute_dtype is not None else 4)
        if usage(tile_b, d_in, 1, h_item0) > _VMEM_BUDGET:
            for cand in (8192, 4096, 2048, 1024, 512, 256, 128):
                if d_in % cand == 0 and usage(tile_b, cand, d_in // cand, 4) <= _VMEM_BUDGET:
                    tile_k = cand
                    break
            # TODO(synk): if D_in has no 128-multiple divisor, pad D_in at the
            # data producer (a wrapper pad of x would cost an extra HBM copy).
    if d_in % tile_k != 0:
        raise ValueError("tile_k must divide D_in")
    num_k = d_in // tile_k

    # Hidden scratch dtype: compute dtype on the fused path, f32 accumulator
    # when K-tiled (keeps partial-sum precision).
    h_dtype = (compute_dtype if (num_k == 1 and compute_dtype is not None)
               else jnp.float32)
    h_item = jnp.dtype(h_dtype).itemsize

    # If still over budget (e.g. un-tileable ragged huge D_in), shrink the batch tile.
    while usage(tile_b, tile_k, num_k, h_item) > _VMEM_BUDGET and tile_b > 64:
        tile_b = _round_up(tile_b // 2, _SUBLANE)

    grid = (pl.cdiv(B, tile_b), num_k)

    # ---- BlockSpecs. Resident operands (constant index_map) get Buffered(1):
    # a second buffer there is pure VMEM waste.
    x_spec = pl.BlockSpec((tile_b, tile_k), lambda i, k: (i, k))
    if num_k == 1:
        w1_spec = pl.BlockSpec((tile_k, hidden), lambda i, k: (0, 0),
                               pipeline_mode=pl.Buffered(1))
    else:
        w1_spec = pl.BlockSpec((tile_k, hidden), lambda i, k: (k, 0))
    w2_spec = pl.BlockSpec((hidden, c_pad), lambda i, k: (0, 0),
                           pipeline_mode=pl.Buffered(1))
    b_spec = pl.BlockSpec((1, c_pad), lambda i, k: (0, 0))
    out_spec = pl.BlockSpec((tile_b, c_pad), lambda i, k: (i, 0))

    vmem_limit = int(usage(tile_b, tile_k, num_k, h_item) * 1.4) + (2 << 20)
    vmem_limit = max(16 << 20, min(vmem_limit, 64 << 20))

    cost = pl.CostEstimate(
        flops=2 * B * (d_in * hidden + hidden * c_pad),
        transcendentals=0,
        bytes_accessed=(x.size * x_itemsize
                        + w1.size * w_itemsize
                        + w2.size * w_itemsize
                        + b_eff.size * 4
                        + B * c_pad * out_itemsize),
    )

    kernel = functools.partial(normal_head_kernel,
                               num_k=num_k, compute_dtype=compute_dtype)

    out = pl.pallas_call(
        kernel,
        out_shape=jax.ShapeDtypeStruct((B, c_pad), x.dtype),
        grid_spec=pltpu.PrefetchScalarGridSpec(
            num_scalar_prefetch=0,
            grid=grid,
            in_specs=[x_spec, w1_spec, w2_spec, b_spec],
            out_specs=out_spec,
            scratch_shapes=[pltpu.VMEM((tile_b, hidden), h_dtype)],
        ),
        compiler_params=pltpu.CompilerParams(
            dimension_semantics=("parallel", "arbitrary"),
            vmem_limit_bytes=vmem_limit,
        ),
        cost_estimate=cost,
    )(x, w1, w2, b_eff)

    if classes != c_pad:
        out = out[:, :classes]
    return out


def normal_head(x, w1, b1, w2, b2, *, compute_dtype=None, tile_b=512, tile_k=None):
    """Convenience wrapper. For long-lived weights prefer calling
    prepare_normal_head_params once and normal_head_apply per step."""
    params = prepare_normal_head_params(w1, b1, w2, b2, compute_dtype=compute_dtype)
    return normal_head_apply(x, params, tile_b=tile_b, tile_k=tile_k)


if __name__ == "__main__":
    key = jax.random.PRNGKey(0)
    kx, k1, kb1, k2, kb2, kx3, k13, kb13, k23, kb23 = jax.random.split(key, 10)

    # --- Test 1: module-default shapes (Linear(1000, 256) -> Linear(256, 16)),
    # f32, fused single-K path.
    batch, input_shape, hidden, classes = 8, 1000, 256, 16
    x = jax.random.normal(kx, (batch, input_shape), dtype=jnp.float32)
    # PyTorch stores Linear weight as (out, in); kernel layout is (in, out),
    # so generate directly in that layout (deterministic init).
    w1 = jax.random.normal(k1, (input_shape, hidden), dtype=jnp.float32) * 0.02
    b1 = jax.random.normal(kb1, (hidden,), dtype=jnp.float32) * 0.01
    w2 = jax.random.normal(k2, (hidden, classes), dtype=jnp.float32) * 0.02
    b2 = jax.random.normal(kb2, (classes,), dtype=jnp.float32) * 0.01

    ref = (x @ w1 + b1[None, :]) @ w2 + b2[None, :]
    out = jax.block_until_ready(normal_head(x, w1, b1, w2, b2))
    assert out.shape == (batch, classes)
    assert jnp.allclose(out, ref, atol=1e-4, rtol=1e-4)

    # --- Test 2: bf16 compute (weights cast once in prep, x cast in-kernel,
    # f32 accumulation) — looser tolerance for the bf16 quantization.
    params_bf16 = prepare_normal_head_params(w1, b1, w2, b2,
                                             compute_dtype=jnp.bfloat16)
    out_bf16 = jax.block_until_ready(normal_head_apply(x, params_bf16))
    assert out_bf16.shape == (batch, classes)
    assert jnp.allclose(out_bf16, ref, atol=5e-2, rtol=5e-2)

    # --- Test 3: K-tiled accumulator path + ragged batch (masked output rows)
    # + >=2 batch grid steps (megacore split).
    b3, d3, c3 = 20, 1024, 10
    x3 = jax.random.normal(kx3, (b3, d3), dtype=jnp.float32)
    w13 = jax.random.normal(k13, (d3, hidden), dtype=jnp.float32) * 0.02
    b13 = jax.random.normal(kb13, (hidden,), dtype=jnp.float32) * 0.01
    w23 = jax.random.normal(k23, (hidden, c3), dtype=jnp.float32) * 0.02
    b23 = jax.random.normal(kb23, (c3,), dtype=jnp.float32) * 0.01

    ref3 = (x3 @ w13 + b13[None, :]) @ w23 + b23[None, :]
    out3 = jax.block_until_ready(normal_head(x3, w13, b13, w23, b23, tile_k=256))
    assert out3.shape == (b3, c3)
    assert jnp.allclose(out3, ref3, atol=2e-4, rtol=2e-4)

    print("KERNEL_OK")
</pallas_src>

<mosaic_0001>
module attributes {stable_mosaic.version = 11 : i64} {
  func.func @normal_head_kernel(%arg0: i32, %arg1: i32, %arg2: memref<8x1000xf32, #tpu.memory_space<vmem>>, %arg3: memref<1000x256xf32, #tpu.memory_space<vmem>>, %arg4: memref<256x128xf32, #tpu.memory_space<vmem>>, %arg5: memref<1x128xf32, #tpu.memory_space<vmem>>, %arg6: memref<8x128xf32, #tpu.memory_space<vmem>>, %arg7: memref<8x256xf32, #tpu.memory_space<vmem>>) attributes {dimension_semantics = [#tpu.dimension_semantics<parallel>, #tpu.dimension_semantics<arbitrary>], iteration_bounds = array<i64: 1, 1>, scalar_prefetch = 0 : i64, scratch_operands = 1 : i64, tpu.core_type = #tpu.core_type<tc>, window_params = [{transform_indices = @transform_0, window_bounds = array<i64: 8, 1000>}, {pipeline_mode = #tpu.pipeline_mode<synchronous>, transform_indices = @transform_1, window_bounds = array<i64: 1000, 256>}, {pipeline_mode = #tpu.pipeline_mode<synchronous>, transform_indices = @transform_2, window_bounds = array<i64: 256, 128>}, {pipeline_mode = #tpu.pipeline_mode<synchronous>, transform_indices = @transform_3, window_bounds = array<i64: 1, 128>}, {transform_indices = @transform_4, window_bounds = array<i64: 8, 128>}]} {
    %c0 = arith.constant 0 : index
    %c0_0 = arith.constant 0 : index
    %0 = vector.load %arg2[%c0, %c0_0] : memref<8x1000xf32, #tpu.memory_space<vmem>>, vector<8x1000xf32>
    %c0_1 = arith.constant 0 : index
    %c0_2 = arith.constant 0 : index
    %1 = vector.load %arg3[%c0_1, %c0_2] : memref<1000x256xf32, #tpu.memory_space<vmem>>, vector<1000x256xf32>
    %cst = arith.constant dense<0.000000e+00> : vector<8x256xf32>
    %2 = tpu.matmul %0, %1, %cst {dimension_numbers = #tpu.dot_dimension_numbers<[1], [0], [0], [1], [0, 0, 1, 1], [], []>} : vector<8x1000xf32>, vector<1000x256xf32>, vector<8x256xf32> -> vector<8x256xf32>
    %c0_3 = arith.constant 0 : index
    %c0_4 = arith.constant 0 : index
    %3 = vector.load %arg7[%c0_3, %c0_4] : memref<8x256xf32, #tpu.memory_space<vmem>>, vector<8x256xf32>
    tpu.vector_store %arg7[%c0_3, %c0_4], %2 {strides = array<i32>} : memref<8x256xf32, #tpu.memory_space<vmem>>, vector<8x256xf32>,
    %c0_5 = arith.constant 0 : index
    %c0_6 = arith.constant 0 : index
    %4 = vector.load %arg7[%c0_5, %c0_6] : memref<8x256xf32, #tpu.memory_space<vmem>>, vector<8x256xf32>
    %c0_7 = arith.constant 0 : index
    %c0_8 = arith.constant 0 : index
    %5 = vector.load %arg4[%c0_7, %c0_8] : memref<256x128xf32, #tpu.memory_space<vmem>>, vector<256x128xf32>
    %cst_9 = arith.constant dense<0.000000e+00> : vector<8x128xf32>
    %6 = tpu.matmul %4, %5, %cst_9 {dimension_numbers = #tpu.dot_dimension_numbers<[1], [0], [0], [1], [0, 0, 1, 1], [], []>} : vector<8x256xf32>, vector<256x128xf32>, vector<8x128xf32> -> vector<8x128xf32>
    %c0_10 = arith.constant 0 : index
    %c0_11 = arith.constant 0 : index
    %7 = vector.load %arg5[%c0_10, %c0_11] : memref<1x128xf32, #tpu.memory_space<vmem>>, vector<1x128xf32>
    %8 = vector.broadcast %7 : vector<1x128xf32> to vector<8x128xf32>
    %9 = arith.addf %6, %8 : vector<8x128xf32>
    %c0_12 = arith.constant 0 : index
    %c0_13 = arith.constant 0 : index
    %10 = vector.load %arg6[%c0_12, %c0_13] : memref<8x128xf32, #tpu.memory_space<vmem>>, vector<8x128xf32>
    tpu.vector_store %arg6[%c0_12, %c0_13], %9 {strides = array<i32>} : memref<8x128xf32, #tpu.memory_space<vmem>>, vector<8x128xf32>,
    return
  }
  func.func @transform_0(%arg0: i32, %arg1: i32) -> (i32, i32) {
    %c0_i32 = arith.constant 0 : i32
    return %arg0, %arg1 : i32, i32
  }
  func.func @transform_1(%arg0: i32, %arg1: i32) -> (i32, i32) {
    %c0_i32 = arith.constant 0 : i32
    %c0_i32_0 = arith.constant 0 : i32
    %c0_i32_1 = arith.constant 0 : i32
    return %c0_i32, %c0_i32_0 : i32, i32
  }
  func.func @transform_2(%arg0: i32, %arg1: i32) -> (i32, i32) {
    %c0_i32 = arith.constant 0 : i32
    %c0_i32_0 = arith.constant 0 : i32
    %c0_i32_1 = arith.constant 0 : i32
    return %c0_i32, %c0_i32_0 : i32, i32
  }
  func.func @transform_3(%arg0: i32, %arg1: i32) -> (i32, i32) {
    %c0_i32 = arith.constant 0 : i32
    %c0_i32_0 = arith.constant 0 : i32
    %c0_i32_1 = arith.constant 0 : i32
    return %c0_i32, %c0_i32_0 : i32, i32
  }
  func.func @transform_4(%arg0: i32, %arg1: i32) -> (i32, i32) {
    %c0_i32 = arith.constant 0 : i32
    %c0_i32_0 = arith.constant 0 : i32
    return %arg0, %c0_i32 : i32, i32
  }
}

</mosaic_0001>

<llo_original>
// kernel: tpu_custom_call.1
$region0: #{tpu_custom_call.1}
  #allocation0 [shape = 'u32[]', space=smem, size = 0x4, offset = 0x4, fixed_abs, tag = 'smem constant byte address 0x4 - core index']
  #allocation1 [shape = 'u32[144,128]{1,0:T(1,128)}', space=vmem, size = 0x12000, scoped, tag = 'internal scratch']
  #allocation2 [shape = 'f32[8,256]{1,0:T(8,128)}', space=vmem, size = 0x2000, scoped, tag = 'scratch operand']
  %s0 = inlined_call_operand.hbm [shape: f32[8,1000], index: 0, kind: input, shape index: {}]
  %s1 = inlined_call_operand.hbm [shape: f32[1000,256], index: 1, kind: input, shape index: {}]
  %s2 = inlined_call_operand.hbm [shape: f32[256,128], index: 2, kind: input, shape index: {}]
  %s3 = inlined_call_operand.vmem [shape: f32[1,128], index: 3, kind: input, shape index: {}]
  %s4 = inlined_call_operand.hbm [shape: f32[8,128], index: 4, kind: output, shape index: {}]
  %s5 = sld [smem:[#allocation0]]
  $region38: #{tpu_custom_call.1} parent=0
    _
  %s7 = ssub.s32 1, %s5
  %s8 = scalar_select 0, %s7, %s5
  $region1: #{tpu_custom_call.1} parent=0
    #allocation3 [shape = 'u8[32768]{0}', space=vmem, size = 0x8000, scoped, tag = 'input window, operand 0, single buffered']
    #allocation4 [shape = 's32[1]{0}', space=sflag, size = 0x4, scoped, tag = 'scoped memory for tpu_custom_call.1']
    #allocation5 [shape = 's32[1]{0}', space=sflag, size = 0x4, scoped, tag = 'scoped memory for tpu_custom_call.1']
    #allocation6 [shape = 'u8[1024000]{0}', space=vmem, size = 0xfa000, scoped, tag = 'input window, operand 1, single buffered']
    #allocation7 [shape = 's32[1]{0}', space=sflag, size = 0x4, scoped, tag = 'scoped memory for tpu_custom_call.1']
    #allocation8 [shape = 'u8[131072]{0}', space=vmem, size = 0x20000, scoped, tag = 'input window, operand 2, single buffered']
    #allocation9 [shape = 'u8[4096]{0}', space=vmem, size = 0x1000, scoped, tag = 'output window, operand 0, single buffered']
    %9 = vsyncpa [#allocation4], 0
    %10 = vsyncpa [#allocation7], 0
    %11 = vsyncpa [#allocation5], 0
    // Predicated region
    $region2: #{tpu_custom_call.1} parent=1 // pred_check
      _
    $region3: #{tpu_custom_call.1} parent=1 // pred_check_branch
      %13 = sbr.rel (0) target = $region5
    $region4: #{tpu_custom_call.1} parent=1 // pred_region
      %s15 = ssub.s32 1024, 1024
      %16 = vsyncadd [#allocation4], %s15
      %s18 = sshll.u32 [#allocation3], 4
      %s19 = int_to_ptr.vmem [resolvable:$true] %s18
      %21 = dma.hbm_to_vmem [thread:$0]  %s0, 1024, %s19, [#allocation4]
    $region5: #{tpu_custom_call.1} parent=1 // pred_fallthru
      _
    // Predicated region
    $region6: #{tpu_custom_call.1} parent=1 // pred_check
      _
    $region7: #{tpu_custom_call.1} parent=1 // pred_check_branch
      %23 = sbr.rel (0) target = $region9
    $region8: #{tpu_custom_call.1} parent=1 // pred_region
      %s25 = ssub.s32 32000, 32000
      %26 = vsyncadd [#allocation7], %s25
      %s27 = sshll.u32 [#allocation6], 4
      %s28 = int_to_ptr.vmem [resolvable:$true] %s27
      %33 = dma.hbm_to_vmem [thread:$0]  %s1, 32000, %s28, [#allocation7], 256, 256, 16
    $region9: #{tpu_custom_call.1} parent=1 // pred_fallthru
      _
    // Predicated region
    $region10: #{tpu_custom_call.1} parent=1 // pred_check
      _
    $region11: #{tpu_custom_call.1} parent=1 // pred_check_branch
      %35 = sbr.rel (0) target = $region13
    $region12: #{tpu_custom_call.1} parent=1 // pred_region
      %s37 = ssub.s32 4096, 4096
      %38 = vsyncadd [#allocation7], %s37
      %s39 = sshll.u32 [#allocation8], 4
      %s40 = int_to_ptr.vmem [resolvable:$true] %s39
      %45 = dma.hbm_to_vmem [thread:$0]  %s2, 4096, %s40, [#allocation7], 128, 128, 8
    $region13: #{tpu_custom_call.1} parent=1 // pred_fallthru
      _
    // Predicated region
    $region14: #{tpu_custom_call.1} parent=1 // pred_check
      _
    $region15: #{tpu_custom_call.1} parent=1 // pred_check_branch
      %47 = sbr.rel (0) target = $region17
    $region16: #{tpu_custom_call.1} parent=1 // pred_region
      _
    $region17: #{tpu_custom_call.1} parent=1 // pred_fallthru
      _
    // Predicated region
    $region18: #{tpu_custom_call.1} parent=1 // pred_check
      _
    $region19: #{tpu_custom_call.1} parent=1 // pred_check_branch
      %49 = sbr.rel (0) target = $region21
    $region20: #{tpu_custom_call.1} parent=1 // pred_region
      %50 = dma.done [#allocation4], 1024
    $region21: #{tpu_custom_call.1} parent=1 // pred_fallthru
      _
    // Predicated region
    $region22: #{tpu_custom_call.1} parent=1 // pred_check
      _
    $region23: #{tpu_custom_call.1} parent=1 // pred_check_branch
      %52 = sbr.rel (0) target = $region25
    $region24: #{tpu_custom_call.1} parent=1 // pred_region
      %53 = dma.done [#allocation7], 32000
    $region25: #{tpu_custom_call.1} parent=1 // pred_fallthru
      _
    // Predicated region
    $region26: #{tpu_custom_call.1} parent=1 // pred_check
      _
    $region27: #{tpu_custom_call.1} parent=1 // pred_check_branch
      %55 = sbr.rel (0) target = $region29
    $region28: #{tpu_custom_call.1} parent=1 // pred_region
      %56 = dma.done [#allocation7], 4096
    $region29: #{tpu_custom_call.1} parent=1 // pred_fallthru
      _
    %v57 = vld [vmem:[#allocation3] sm:$0xff]
    %v58 = vld [vmem:[#allocation3 + $0x8] sm:$0xff]
    %v59 = vld [vmem:[#allocation3 + $0x10] sm:$0xff]
    %v60 = vld [vmem:[#allocation3 + $0x18] sm:$0xff]
    %v61 = vld [vmem:[#allocation3 + $0x20] sm:$0xff]
    %v62 = vld [vmem:[#allocation3 + $0x28] sm:$0xff]
    %v63 = vld [vmem:[#allocation3 + $0x30] sm:$0xff]
    %v64 = vld [vmem:[#allocation3 + $0x38] sm:$0xff]
    %v65 = vld [vmem:[#allocation6] sm:$0xff]
    %v66 = vld [vmem:[#allocation6 + $0x8] sm:$0xff]
    %v67 = vld [vmem:[#allocation6 + $0x10] sm:$0xff]
    %v68 = vld [vmem:[#allocation6 + $0x18] sm:$0xff]
    %v69 = vld [vmem:[#allocation6 + $0x20] sm:$0xff]
    %v70 = vld [vmem:[#allocation6 + $0x28] sm:$0xff]
    %v71 = vld [vmem:[#allocation6 + $0x30] sm:$0xff]
    %v72 = vld [vmem:[#allocation6 + $0x38] sm:$0xff]
    %v73 = vld [vmem:[#allocation6 + $0x40] sm:$0xff]
    %v74 = vld [vmem:[#allocation6 + $0x48] sm:$0xff]
    %v75 = vld [vmem:[#allocation6 + $0x50] sm:$0xff]
    %v76 = vld [vmem:[#allocation6 + $0x58] sm:$0xff]
    %v77 = vld [vmem:[#allocation6 + $0x60] sm:$0xff]
    %v78 = vld [vmem:[#allocation6 + $0x68] sm:$0xff]
    %v79 = vld [vmem:[#allocation6 + $0x70] sm:$0xff]
    %v80 = vld [vmem:[#allocation6 + $0x78] sm:$0xff]
    %v81 = vld [vmem:[#allocation6 + $0x80] sm:$0xff]
    %v82 = vld [vmem:[#allocation6 + $0x88] sm:$0xff]
    %v83 = vld [vmem:[#allocation6 + $0x90] sm:$0xff]
    %v84 = vld [vmem:[#allocation6 + $0x98] sm:$0xff]
    %v85 = vld [vmem:[#allocation6 + $0xa0] sm:$0xff]
    %v86 = vld [vmem:[#allocation6 + $0xa8] sm:$0xff]
    %v87 = vld [vmem:[#allocation6 + $0xb0] sm:$0xff]
    %v88 = vld [vmem:[#allocation6 + $0xb8] sm:$0xff]
    %v89 = vld [vmem:[#allocation6 + $0xc0] sm:$0xff]
    %v90 = vld [vmem:[#allocation6 + $0xc8] sm:$0xff]
    %v91 = vld [vmem:[#allocation6 + $0xd0] sm:$0xff]
    %v92 = vld [vmem:[#allocation6 + $0xd8] sm:$0xff]
    %v93 = vld [vmem:[#allocation6 + $0xe0] sm:$0xff]
    %v94 = vld [vmem:[#allocation6 + $0xe8] sm:$0xff]
    %v95 = vld [vmem:[#allocation6 + $0xf0] sm:$0xff]
    %v96 = vld [vmem:[#allocation6 + $0xf8] sm:$0xff]
    %v97 = vld [vmem:[#allocation6 + $0x100] sm:$0xff]
    %v98 = vld [vmem:[#allocation6 + $0x108] sm:$0xff]
    %v99 = vld [vmem:[#allocation6 + $0x110] sm:$0xff]
    %v100 = vld [vmem:[#allocation6 + $0x118] sm:$0xff]
    %v101 = vld [vmem:[#allocation6 + $0x120] sm:$0xff]
    %v102 = vld [vmem:[#allocation6 + $0x128] sm:$0xff]
    %v103 = vld [vmem:[#allocation6 + $0x130] sm:$0xff]
    %v104 = vld [vmem:[#allocation6 + $0x138] sm:$0xff]
    %v105 = vld [vmem:[#allocation6 + $0x140] sm:$0xff]
    %v106 = vld [vmem:[#allocation6 + $0x148] sm:$0xff]
    %v107 = vld [vmem:[#allocation6 + $0x150] sm:$0xff]
    %v108 = vld [vmem:[#allocation6 + $0x158] sm:$0xff]
    %v109 = vld [vmem:[#allocation6 + $0x160] sm:$0xff]
    %v110 = vld [vmem:[#allocation6 + $0x168] sm:$0xff]
    %v111 = vld [vmem:[#allocation6 + $0x170] sm:$0xff]
    %v112 = vld [vmem:[#allocation6 + $0x178] sm:$0xff]
    %v113 = vld [vmem:[#allocation6 + $0x180] sm:$0xff]
    %v114 = vld [vmem:[#allocation6 + $0x188] sm:$0xff]
    %v115 = vld [vmem:[#allocation6 + $0x190] sm:$0xff]
    %v116 = vld [vmem:[#allocation6 + $0x198] sm:$0xff]
    %v117 = vld [vmem:[#allocation6 + $0x1a0] sm:$0xff]
    %v118 = vld [vmem:[#allocation6 + $0x1a8] sm:$0xff]
    %v119 = vld [vmem:[#allocation6 + $0x1b0] sm:$0xff]
    %v120 = vld [vmem:[#allocation6 + $0x1b8] sm:$0xff]
    %v121 = vld [vmem:[#allocation6 + $0x1c0] sm:$0xff]
    %v122 = vld [vmem:[#allocation6 + $0x1c8] sm:$0xff]
    %v123 = vld [vmem:[#allocation6 + $0x1d0] sm:$0xff]
    %v124 = vld [vmem:[#allocation6 + $0x1d8] sm:$0xff]
    %v125 = vld [vmem:[#allocation6 + $0x1e0] sm:$0xff]
    %v126 = vld [vmem:[#allocation6 + $0x1e8] sm:$0xff]
    %v127 = vld [vmem:[#allocation6 + $0x1f0] sm:$0xff]
    %v128 = vld [vmem:[#allocation6 + $0x1f8] sm:$0xff]
    %v129 = vld [vmem:[#allocation6 + $0x200] sm:$0xff]
    %v130 = vld [vmem:[#allocation6 + $0x208] sm:$0xff]
    %v131 = vld [vmem:[#allocation6 + $0x210] sm:$0xff]
    %v132 = vld [vmem:[#allocation6 + $0x218] sm:$0xff]
    %v133 = vld [vmem:[#allocation6 + $0x220] sm:$0xff]
    %v134 = vld [vmem:[#allocation6 + $0x228] sm:$0xff]
    %v135 = vld [vmem:[#allocation6 + $0x230] sm:$0xff]
    %v136 = vld [vmem:[#allocation6 + $0x238] sm:$0xff]
    %v137 = vld [vmem:[#allocation6 + $0x240] sm:$0xff]
    %v138 = vld [vmem:[#allocation6 + $0x248] sm:$0xff]
    %v139 = vld [vmem:[#allocation6 + $0x250] sm:$0xff]
    %v140 = vld [vmem:[#allocation6 + $0x258] sm:$0xff]
    %v141 = vld [vmem:[#allocation6 + $0x260] sm:$0xff]
    %v142 = vld [vmem:[#allocation6 + $0x268] sm:$0xff]
    %v143 = vld [vmem:[#allocation6 + $0x270] sm:$0xff]
    %v144 = vld [vmem:[#allocation6 + $0x278] sm:$0xff]
    %v145 = vld [vmem:[#allocation6 + $0x280] sm:$0xff]
    %v146 = vld [vmem:[#allocation6 + $0x288] sm:$0xff]
    %v147 = vld [vmem:[#allocation6 + $0x290] sm:$0xff]
    %v148 = vld [vmem:[#allocation6 + $0x298] sm:$0xff]
    %v149 = vld [vmem:[#allocation6 + $0x2a0] sm:$0xff]
    %v150 = vld [vmem:[#allocation6 + $0x2a8] sm:$0xff]
    %v151 = vld [vmem:[#allocation6 + $0x2b0] sm:$0xff]
    %v152 = vld [vmem:[#allocation6 + $0x2b8] sm:$0xff]
    %v153 = vld [vmem:[#allocation6 + $0x2c0] sm:$0xff]
    %v154 = vld [vmem:[#allocation6 + $0x2c8] sm:$0xff]
    %v155 = vld [vmem:[#allocation6 + $0x2d0] sm:$0xff]
    %v156 = vld [vmem:[#allocation6 + $0x2d8] sm:$0xff]
    %v157 = vld [vmem:[#allocation6 + $0x2e0] sm:$0xff]
    %v158 = vld [vmem:[#allocation6 + $0x2e8] sm:$0xff]
    %v159 = vld [vmem:[#allocation6 + $0x2f0] sm:$0xff]
    %v160 = vld [vmem:[#allocation6 + $0x2f8] sm:$0xff]
    %v161 = vld [vmem:[#allocation6 + $0x300] sm:$0xff]
    %v162 = vld [vmem:[#allocation6 + $0x308] sm:$0xff]
    %v163 = vld [vmem:[#allocation6 + $0x310] sm:$0xff]
    %v164 = vld [vmem:[#allocation6 + $0x318] sm:$0xff]
    %v165 = vld [vmem:[#allocation6 + $0x320] sm:$0xff]
    %v166 = vld [vmem:[#allocation6 + $0x328] sm:$0xff]
    %v167 = vld [vmem:[#allocation6 + $0x330] sm:$0xff]
    %v168 = vld [vmem:[#allocation6 + $0x338] sm:$0xff]
    %v169 = vld [vmem:[#allocation6 + $0x340] sm:$0xff]
    %v170 = vld [vmem:[#allocation6 + $0x348] sm:$0xff]
    %v171 = vld [vmem:[#allocation6 + $0x350] sm:$0xff]
    %v172 = vld [vmem:[#allocation6 + $0x358] sm:$0xff]
    %v173 = vld [vmem:[#allocation6 + $0x360] sm:$0xff]
    %v174 = vld [vmem:[#allocation6 + $0x368] sm:$0xff]
    %v175 = vld [vmem:[#allocation6 + $0x370] sm:$0xff]
    %v176 = vld [vmem:[#allocation6 + $0x378] sm:$0xff]
    %v177 = vld [vmem:[#allocation6 + $0x380] sm:$0xff]
    %v178 = vld [vmem:[#allocation6 + $0x388] sm:$0xff]
    %v179 = vld [vmem:[#allocation6 + $0x390] sm:$0xff]
    %v180 = vld [vmem:[#allocation6 + $0x398] sm:$0xff]
    %v181 = vld [vmem:[#allocation6 + $0x3a0] sm:$0xff]
    %v182 = vld [vmem:[#allocation6 + $0x3a8] sm:$0xff]
    %v183 = vld [vmem:[#allocation6 + $0x3b0] sm:$0xff]
    %v184 = vld [vmem:[#allocation6 + $0x3b8] sm:$0xff]
    %v185 = vld [vmem:[#allocation6 + $0x3c0] sm:$0xff]
    %v186 = vld [vmem:[#allocation6 + $0x3c8] sm:$0xff]
    %v187 = vld [vmem:[#allocation6 + $0x3d0] sm:$0xff]
    %v188 = vld [vmem:[#allocation6 + $0x3d8] sm:$0xff]
    %v189 = vld [vmem:[#allocation6 + $0x3e0] sm:$0xff]
    %v190 = vld [vmem:[#allocation6 + $0x3e8] sm:$0xff]
    %v191 = vld [vmem:[#allocation6 + $0x3f0] sm:$0xff]
    %v192 = vld [vmem:[#allocation6 + $0x3f8] sm:$0xff]
    %v193 = vld [vmem:[#allocation6 + $0x400] sm:$0xff]
    %v194 = vld [vmem:[#allocation6 + $0x408] sm:$0xff]
    %v195 = vld [vmem:[#allocation6 + $0x410] sm:$0xff]
    %v196 = vld [vmem:[#allocation6 + $0x418] sm:$0xff]
    %v197 = vld [vmem:[#allocation6 + $0x420] sm:$0xff]
    %v198 = vld [vmem:[#allocation6 + $0x428] sm:$0xff]
    %v199 = vld [vmem:[#allocation6 + $0x430] sm:$0xff]
    %v200 = vld [vmem:[#allocation6 + $0x438] sm:$0xff]
    %v201 = vld [vmem:[#allocation6 + $0x440] sm:$0xff]
    %v202 = vld [vmem:[#allocation6 + $0x448] sm:$0xff]
    %v203 = vld [vmem:[#allocation6 + $0x450] sm:$0xff]
    %v204 = vld [vmem:[#allocation6 + $0x458] sm:$0xff]
    %v205 = vld [vmem:[#allocation6 + $0x460] sm:$0xff]
    %v206 = vld [vmem:[#allocation6 + $0x468] sm:$0xff]
    %v207 = vld [vmem:[#allocation6 + $0x470] sm:$0xff]
    %v208 = vld [vmem:[#allocation6 + $0x478] sm:$0xff]
    %v209 = vld [vmem:[#allocation6 + $0x480] sm:$0xff]
    %v210 = vld [vmem:[#allocation6 + $0x488] sm:$0xff]
    %v211 = vld [vmem:[#allocation6 + $0x490] sm:$0xff]
    %v212 = vld [vmem:[#allocation6 + $0x498] sm:$0xff]
    %v213 = vld [vmem:[#allocation6 + $0x4a0] sm:$0xff]
    %v214 = vld [vmem:[#allocation6 + $0x4a8] sm:$0xff]
    %v215 = vld [vmem:[#allocation6 + $0x4b0] sm:$0xff]
    %v216 = vld [vmem:[#allocation6 + $0x4b8] sm:$0xff]
    %v217 = vld [vmem:[#allocation6 + $0x4c0] sm:$0xff]
    %v218 = vld [vmem:[#allocation6 + $0x4c8] sm:$0xff]
    %v219 = vld [vmem:[#allocation6 + $0x4d0] sm:$0xff]
    %v220 = vld [vmem:[#allocation6 + $0x4d8] sm:$0xff]
    %v221 = vld [vmem:[#allocation6 + $0x4e0] sm:$0xff]
    %v222 = vld [vmem:[#allocation6 + $0x4e8] sm:$0xff]
    %v223 = vld [vmem:[#allocation6 + $0x4f0] sm:$0xff]
    %v224 = vld [vmem:[#allocation6 + $0x4f8] sm:$0xff]
    %v225 = vld [vmem:[#allocation6 + $0x500] sm:$0xff]
    %v226 = vld [vmem:[#allocation6 + $0x508] sm:$0xff]
    %v227 = vld [vmem:[#allocation6 + $0x510] sm:$0xff]
    %v228 = vld [vmem:[#allocation6 + $0x518] sm:$0xff]
    %v229 = vld [vmem:[#allocation6 + $0x520] sm:$0xff]
    %v230 = vld [vmem:[#allocation6 + $0x528] sm:$0xff]
    %v231 = vld [vmem:[#allocation6 + $0x530] sm:$0xff]
    %v232 = vld [vmem:[#allocation6 + $0x538] sm:$0xff]
    %v233 = vld [vmem:[#allocation6 + $0x540] sm:$0xff]
    %v234 = vld [vmem:[#allocation6 + $0x548] sm:$0xff]
    %v235 = vld [vmem:[#allocation6 + $0x550] sm:$0xff]
    %v236 = vld [vmem:[#allocation6 + $0x558] sm:$0xff]
    %v237 = vld [vmem:[#allocation6 + $0x560] sm:$0xff]
    %v238 = vld [vmem:[#allocation6 + $0x568] sm:$0xff]
    %v239 = vld [vmem:[#allocation6 + $0x570] sm:$0xff]
    %v240 = vld [vmem:[#allocation6 + $0x578] sm:$0xff]
    %v241 = vld [vmem:[#allocation6 + $0x580] sm:$0xff]
    %v242 = vld [vmem:[#allocation6 + $0x588] sm:$0xff]
    %v243 = vld [vmem:[#allocation6 + $0x590] sm:$0xff]
    %v244 = vld [vmem:[#allocation6 + $0x598] sm:$0xff]
    %v245 = vld [vmem:[#allocation6 + $0x5a0] sm:$0xff]
    %v246 = vld [vmem:[#allocation6 + $0x5a8] sm:$0xff]
    %v247 = vld [vmem:[#allocation6 + $0x5b0] sm:$0xff]
    %v248 = vld [vmem:[#allocation6 + $0x5b8] sm:$0xff]
    %v249 = vld [vmem:[#allocation6 + $0x5c0] sm:$0xff]
    %v250 = vld [vmem:[#allocation6 + $0x5c8] sm:$0xff]
    %v251 = vld [vmem:[#allocation6 + $0x5d0] sm:$0xff]
    %v252 = vld [vmem:[#allocation6 + $0x5d8] sm:$0xff]
    %v253 = vld [vmem:[#allocation6 + $0x5e0] sm:$0xff]
    %v254 = vld [vmem:[#allocation6 + $0x5e8] sm:$0xff]
    %v255 = vld [vmem:[#allocation6 + $0x5f0] sm:$0xff]
    %v256 = vld [vmem:[#allocation6 + $0x5f8] sm:$0xff]
    %v257 = vld [vmem:[#allocation6 + $0x600] sm:$0xff]
    %v258 = vld [vmem:[#allocation6 + $0x608] sm:$0xff]
    %v259 = vld [vmem:[#allocation6 + $0x610] sm:$0xff]
    %v260 = vld [vmem:[#allocation6 + $0x618] sm:$0xff]
    %v261 = vld [vmem:[#allocation6 + $0x620] sm:$0xff]
    %v262 = vld [vmem:[#allocation6 + $0x628] sm:$0xff]
    %v263 = vld [vmem:[#allocation6 + $0x630] sm:$0xff]
    %v264 = vld [vmem:[#allocation6 + $0x638] sm:$0xff]
    %v265 = vld [vmem:[#allocation6 + $0x640] sm:$0xff]
    %v266 = vld [vmem:[#allocation6 + $0x648] sm:$0xff]
    %v267 = vld [vmem:[#allocation6 + $0x650] sm:$0xff]
    %v268 = vld [vmem:[#allocation6 + $0x658] sm:$0xff]
    %v269 = vld [vmem:[#allocation6 + $0x660] sm:$0xff]
    %v270 = vld [vmem:[#allocation6 + $0x668] sm:$0xff]
    %v271 = vld [vmem:[#allocation6 + $0x670] sm:$0xff]
    %v272 = vld [vmem:[#allocation6 + $0x678] sm:$0xff]
    %v273 = vld [vmem:[#allocation6 + $0x680] sm:$0xff]
    %v274 = vld [vmem:[#allocation6 + $0x688] sm:$0xff]
    %v275 = vld [vmem:[#allocation6 + $0x690] sm:$0xff]
    %v276 = vld [vmem:[#allocation6 + $0x698] sm:$0xff]
    %v277 = vld [vmem:[#allocation6 + $0x6a0] sm:$0xff]
    %v278 = vld [vmem:[#allocation6 + $0x6a8] sm:$0xff]
    %v279 = vld [vmem:[#allocation6 + $0x6b0] sm:$0xff]
    %v280 = vld [vmem:[#allocation6 + $0x6b8] sm:$0xff]
    %v281 = vld [vmem:[#allocation6 + $0x6c0] sm:$0xff]
    %v282 = vld [vmem:[#allocation6 + $0x6c8] sm:$0xff]
    %v283 = vld [vmem:[#allocation6 + $0x6d0] sm:$0xff]
    %v284 = vld [vmem:[#allocation6 + $0x6d8] sm:$0xff]
    %v285 = vld [vmem:[#allocation6 + $0x6e0] sm:$0xff]
    %v286 = vld [vmem:[#allocation6 + $0x6e8] sm:$0xff]
    %v287 = vld [vmem:[#allocation6 + $0x6f0] sm:$0xff]
    %v288 = vld [vmem:[#allocation6 + $0x6f8] sm:$0xff]
    %v289 = vld [vmem:[#allocation6 + $0x700] sm:$0xff]
    %v290 = vld [vmem:[#allocation6 + $0x708] sm:$0xff]
    %v291 = vld [vmem:[#allocation6 + $0x710] sm:$0xff]
    %v292 = vld [vmem:[#allocation6 + $0x718] sm:$0xff]
    %v293 = vld [vmem:[#allocation6 + $0x720] sm:$0xff]
    %v294 = vld [vmem:[#allocation6 + $0x728] sm:$0xff]
    %v295 = vld [vmem:[#allocation6 + $0x730] sm:$0xff]
    %v296 = vld [vmem:[#allocation6 + $0x738] sm:$0xff]
    %v297 = vld [vmem:[#allocation6 + $0x740] sm:$0xff]
    %v298 = vld [vmem:[#allocation6 + $0x748] sm:$0xff]
    %v299 = vld [vmem:[#allocation6 + $0x750] sm:$0xff]
    %v300 = vld [vmem:[#allocation6 + $0x758] sm:$0xff]
    %v301 = vld [vmem:[#allocation6 + $0x760] sm:$0xff]
    %v302 = vld [vmem:[#allocation6 + $0x768] sm:$0xff]
    %v303 = vld [vmem:[#allocation6 + $0x770] sm:$0xff]
    %v304 = vld [vmem:[#allocation6 + $0x778] sm:$0xff]
    %v305 = vld [vmem:[#allocation6 + $0x780] sm:$0xff]
    %v306 = vld [vmem:[#allocation6 + $0x788] sm:$0xff]
    %v307 = vld [vmem:[#allocation6 + $0x790] sm:$0xff]
    %v308 = vld [vmem:[#allocation6 + $0x798] sm:$0xff]
    %v309 = vld [vmem:[#allocation6 + $0x7a0] sm:$0xff]
    %v310 = vld [vmem:[#allocation6 + $0x7a8] sm:$0xff]
    %v311 = vld [vmem:[#allocation6 + $0x7b0] sm:$0xff]
    %v312 = vld [vmem:[#allocation6 + $0x7b8] sm:$0xff]
    %v313 = vld [vmem:[#allocation6 + $0x7c0] sm:$0xff]
    %v314 = vld [vmem:[#allocation6 + $0x7c8] sm:$0xff]
    %vm315 = vcmask 850944
    %v317 = vsel %vm315, %v64, 0
    %319 = vmatprep.subr.mxu0 %v66
    %320 = vmatpush1.msra.mxu0 %v65
    %321 = vmatprep.subr.mxu0 %v68
    %322 = vmatpush1.msra.mxu0 %v67
    %323 = vmatprep.subr.mxu0 %v70
    %324 = vmatpush1.msra.mxu0 %v69
    %325 = vmatprep.subr.mxu0 %v72
    %326 = vmatpush1.msra.mxu0 %v71
    %327 = vmatprep.subr.mxu0 %v74
    %328 = vmatpush1.msra.mxu0 %v73
    %329 = vmatprep.subr.mxu0 %v76
    %330 = vmatpush1.msra.mxu0 %v75
    %331 = vmatprep.subr.mxu0 %v78
    %332 = vmatpush1.msra.mxu0 %v77
    %333 = vmatprep.subr.mxu0 %v80
    %334 = vmatpush1.msra.mxu0 %v79
    %335 = vmatprep.subr.mxu0 %v82
    %336 = vmatpush1.msra.mxu0 %v81
    %337 = vmatprep.subr.mxu0 %v84
    %338 = vmatpush1.msra.mxu0 %v83
    %339 = vmatprep.subr.mxu0 %v86
    %340 = vmatpush1.msra.mxu0 %v85
    %341 = vmatprep.subr.mxu0 %v88
    %342 = vmatpush1.msra.mxu0 %v87
    %343 = vmatprep.subr.mxu0 %v90
    %344 = vmatpush1.msra.mxu0 %v89
    %345 = vmatprep.subr.mxu0 %v92
    %346 = vmatpush1.msra.mxu0 %v91
    %347 = vmatprep.subr.mxu0 %v94
    %348 = vmatpush1.msra.mxu0 %v93
    %349 = vmatprep.subr.mxu0 %v96
    %350 = vmatpush1.msra.mxu0 %v95
    %351 = vmatprep.subr.mxu0 %v98
    %352 = vmatpush1.msra.mxu0 %v97
    %353 = vmatprep.subr.mxu0 %v100
    %354 = vmatpush1.msra.mxu0 %v99
    %355 = vmatprep.subr.mxu0 %v102
    %356 = vmatpush1.msra.mxu0 %v101
    %357 = vmatprep.subr.mxu0 %v104
    %358 = vmatpush1.msra.mxu0 %v103
    %359 = vmatprep.subr.mxu0 %v106
    %360 = vmatpush1.msra.mxu0 %v105
    %361 = vmatprep.subr.mxu0 %v108
    %362 = vmatpush1.msra.mxu0 %v107
    %363 = vmatprep.subr.mxu0 %v110
    %364 = vmatpush1.msra.mxu0 %v109
    %365 = vmatprep.subr.mxu0 %v112
    %366 = vmatpush1.msra.mxu0 %v111
    %367 = vmatprep.subr.mxu0 %v114
    %368 = vmatpush1.msra.mxu0 %v113
    %369 = vmatprep.subr.mxu0 %v116
    %370 = vmatpush1.msra.mxu0 %v115
    %371 = vmatprep.subr.mxu0 %v118
    %372 = vmatpush1.msra.mxu0 %v117
    %373 = vmatprep.subr.mxu0 %v120
    %374 = vmatpush1.msra.mxu0 %v119
    %375 = vmatprep.subr.mxu0 %v122
    %376 = vmatpush1.msra.mxu0 %v121
    %377 = vmatprep.subr.mxu0 %v124
    %378 = vmatpush1.msra.mxu0 %v123
    %379 = vmatprep.subr.mxu0 %v126
    %380 = vmatpush1.msra.mxu0 %v125
    %381 = vmatprep.subr.mxu0 %v128
    %382 = vmatpush1.msra.mxu0 %v127
    %383 = vmatprep.mubr.f32.mxu0 %v58
    %384 = vmatmul.mubr.f32.gmra.mrb[0].mxu0 %v57
    %v385 = vpop.f32.mrb[0].mxu0
    %v386 = vadd.f32 0.0, %v385
    %v387 = vpop.f32.mrb[0].mxu0
    %v388 = vadd.f32 0.0, %v387
    %389 = vdwg.mxu0
    %390 = vmatprep.subr.mxu0 %v130
    %391 = vmatpush1.msra.mxu0 %v129
    %392 = vmatprep.subr.mxu0 %v132
    %393 = vmatpush1.msra.mxu0 %v131
    %394 = vmatprep.subr.mxu0 %v134
    %395 = vmatpush1.msra.mxu0 %v133
    %396 = vmatprep.subr.mxu0 %v136
    %397 = vmatpush1.msra.mxu0 %v135
    %398 = vmatprep.subr.mxu0 %v138
    %399 = vmatpush1.msra.mxu0 %v137
    %400 = vmatprep.subr.mxu0 %v140
    %401 = vmatpush1.msra.mxu0 %v139
    %402 = vmatprep.subr.mxu0 %v142
    %403 = vmatpush1.msra.mxu0 %v141
    %404 = vmatprep.subr.mxu0 %v144
    %405 = vmatpush1.msra.mxu0 %v143
    %406 = vmatprep.subr.mxu0 %v146
    %407 = vmatpush1.msra.mxu0 %v145
    %408 = vmatprep.subr.mxu0 %v148
    %409 = vmatpush1.msra.mxu0 %v147
    %410 = vmatprep.subr.mxu0 %v150
    %411 = vmatpush1.msra.mxu0 %v149
    %412 = vmatprep.subr.mxu0 %v152
    %413 = vmatpush1.msra.mxu0 %v151
    %414 = vmatprep.subr.mxu0 %v154
    %415 = vmatpush1.msra.mxu0 %v153
    %416 = vmatprep.subr.mxu0 %v156
    %417 = vmatpush1.msra.mxu0 %v155
    %418 = vmatprep.subr.mxu0 %v158
    %419 = vmatpush1.msra.mxu0 %v157
    %420 = vmatprep.subr.mxu0 %v160
    %421 = vmatpush1.msra.mxu0 %v159
    %422 = vmatprep.subr.mxu0 %v162
    %423 = vmatpush1.msra.mxu0 %v161
    %424 = vmatprep.subr.mxu0 %v164
    %425 = vmatpush1.msra.mxu0 %v163
    %426 = vmatprep.subr.mxu0 %v166
    %427 = vmatpush1.msra.mxu0 %v165
    %428 = vmatprep.subr.mxu0 %v168
    %429 = vmatpush1.msra.mxu0 %v167
    %430 = vmatprep.subr.mxu0 %v170
    %431 = vmatpush1.msra.mxu0 %v169
    %432 = vmatprep.subr.mxu0 %v172
    %433 = vmatpush1.msra.mxu0 %v171
    %434 = vmatprep.subr.mxu0 %v174
    %435 = vmatpush1.msra.mxu0 %v173
    %436 = vmatprep.subr.mxu0 %v176
    %437 = vmatpush1.msra.mxu0 %v175
    %438 = vmatprep.subr.mxu0 %v178
    %439 = vmatpush1.msra.mxu0 %v177
    %440 = vmatprep.subr.mxu0 %v180
    %441 = vmatpush1.msra.mxu0 %v179
    %442 = vmatprep.subr.mxu0 %v182
    %443 = vmatpush1.msra.mxu0 %v181
    %444 = vmatprep.subr.mxu0 %v184
    %445 = vmatpush1.msra.mxu0 %v183
    %446 = vmatprep.subr.mxu0 %v186
    %447 = vmatpush1.msra.mxu0 %v185
    %448 = vmatprep.subr.mxu0 %v188
    %449 = vmatpush1.msra.mxu0 %v187
    %450 = vmatprep.subr.mxu0 %v190
    %451 = vmatpush1.msra.mxu0 %v189
    %452 = vmatprep.subr.mxu0 %v192
    %453 = vmatpush1.msra.mxu0 %v191
    %454 = vmatprep.mubr.f32.mxu0 %v60
    %455 = vmatmul.mubr.f32.gmra.mrb[0].mxu0 %v59
    %v456 = vpop.f32.mrb[0].mxu0
    %v457 = vadd.f32 %v386, %v456
    %v458 = vpop.f32.mrb[0].mxu0
    %v459 = vadd.f32 %v388, %v458
    %460 = vdwg.mxu0
    %461 = vmatprep.subr.mxu0 %v194
    %462 = vmatpush1.msra.mxu0 %v193
    %463 = vmatprep.subr.mxu0 %v196
    %464 = vmatpush1.msra.mxu0 %v195
    %465 = vmatprep.subr.mxu0 %v198
    %466 = vmatpush1.msra.mxu0 %v197
    %467 = vmatprep.subr.mxu0 %v200
    %468 = vmatpush1.msra.mxu0 %v199
    %469 = vmatprep.subr.mxu0 %v202
    %470 = vmatpush1.msra.mxu0 %v201
    %471 = vmatprep.subr.mxu0 %v204
    %472 = vmatpush1.msra.mxu0 %v203
    %473 = vmatprep.subr.mxu0 %v206
    %474 = vmatpush1.msra.mxu0 %v205
    %475 = vmatprep.subr.mxu0 %v208
    %476 = vmatpush1.msra.mxu0 %v207
    %477 = vmatprep.subr.mxu0 %v210
    %478 = vmatpush1.msra.mxu0 %v209
    %479 = vmatprep.subr.mxu0 %v212
    %480 = vmatpush1.msra.mxu0 %v211
    %481 = vmatprep.subr.mxu0 %v214
    %482 = vmatpush1.msra.mxu0 %v213
    %483 = vmatprep.subr.mxu0 %v216
    %484 = vmatpush1.msra.mxu0 %v215
    %485 = vmatprep.subr.mxu0 %v218
    %486 = vmatpush1.msra.mxu0 %v217
    %487 = vmatprep.subr.mxu0 %v220
    %488 = vmatpush1.msra.mxu0 %v219
    %489 = vmatprep.subr.mxu0 %v222
    %490 = vmatpush1.msra.mxu0 %v221
    %491 = vmatprep.subr.mxu0 %v224
    %492 = vmatpush1.msra.mxu0 %v223
    %493 = vmatprep.subr.mxu0 %v226
    %494 = vmatpush1.msra.mxu0 %v225
    %495 = vmatprep.subr.mxu0 %v228
    %496 = vmatpush1.msra.mxu0 %v227
    %497 = vmatprep.subr.mxu0 %v230
    %498 = vmatpush1.msra.mxu0 %v229
    %499 = vmatprep.subr.mxu0 %v232
    %500 = vmatpush1.msra.mxu0 %v231
    %501 = vmatprep.subr.mxu0 %v234
    %502 = vmatpush1.msra.mxu0 %v233
    %503 = vmatprep.subr.mxu0 %v236
    %504 = vmatpush1.msra.mxu0 %v235
    %505 = vmatprep.subr.mxu0 %v238
    %506 = vmatpush1.msra.mxu0 %v237
    %507 = vmatprep.subr.mxu0 %v240
    %508 = vmatpush1.msra.mxu0 %v239
    %509 = vmatprep.subr.mxu0 %v242
    %510 = vmatpush1.msra.mxu0 %v241
    %511 = vmatprep.subr.mxu0 %v244
    %512 = vmatpush1.msra.mxu0 %v243
    %513 = vmatprep.subr.mxu0 %v246
    %514 = vmatpush1.msra.mxu0 %v245
    %515 = vmatprep.subr.mxu0 %v248
    %516 = vmatpush1.msra.mxu0 %v247
    %517 = vmatprep.subr.mxu0 %v250
    %518 = vmatpush1.msra.mxu0 %v249
    %519 = vmatprep.subr.mxu0 %v252
    %520 = vmatpush1.msra.mxu0 %v251
    %521 = vmatprep.subr.mxu0 %v254
    %522 = vmatpush1.msra.mxu0 %v253
    %523 = vmatprep.subr.mxu0 %v256
    %524 = vmatpush1.msra.mxu0 %v255
    %525 = vmatprep.mubr.f32.mxu0 %v62
    %526 = vmatmul.mubr.f32.gmra.mrb[0].mxu0 %v61
    %v527 = vpop.f32.mrb[0].mxu0
    %v528 = vadd.f32 %v457, %v527
    %v529 = vpop.f32.mrb[0].mxu0
    %v530 = vadd.f32 %v459, %v529
    %531 = vdwg.mxu0
    %532 = vmatprep.subr.mxu0 %v258
    %533 = vmatpush1.msra.mxu0 %v257
    %534 = vmatprep.subr.mxu0 %v260
    %535 = vmatpush1.msra.mxu0 %v259
    %536 = vmatprep.subr.mxu0 %v262
    %537 = vmatpush1.msra.mxu0 %v261
    %538 = vmatprep.subr.mxu0 %v264
    %539 = vmatpush1.msra.mxu0 %v263
    %540 = vmatprep.subr.mxu0 %v266
    %541 = vmatpush1.msra.mxu0 %v265
    %542 = vmatprep.subr.mxu0 %v268
    %543 = vmatpush1.msra.mxu0 %v267
    %544 = vmatprep.subr.mxu0 %v270
    %545 = vmatpush1.msra.mxu0 %v269
    %546 = vmatprep.subr.mxu0 %v272
    %547 = vmatpush1.msra.mxu0 %v271
    %548 = vmatprep.subr.mxu0 %v274
    %549 = vmatpush1.msra.mxu0 %v273
    %550 = vmatprep.subr.mxu0 %v276
    %551 = vmatpush1.msra.mxu0 %v275
    %552 = vmatprep.subr.mxu0 %v278
    %553 = vmatpush1.msra.mxu0 %v277
    %554 = vmatprep.subr.mxu0 %v280
    %555 = vmatpush1.msra.mxu0 %v279
    %556 = vmatprep.subr.mxu0 %v282
    %557 = vmatpush1.msra.mxu0 %v281
    %558 = vmatprep.subr.mxu0 %v284
    %559 = vmatpush1.msra.mxu0 %v283
    %560 = vmatprep.subr.mxu0 %v286
    %561 = vmatpush1.msra.mxu0 %v285
    %562 = vmatprep.subr.mxu0 %v288
    %563 = vmatpush1.msra.mxu0 %v287
    %564 = vmatprep.subr.mxu0 %v290
    %565 = vmatpush1.msra.mxu0 %v289
    %566 = vmatprep.subr.mxu0 %v292
    %567 = vmatpush1.msra.mxu0 %v291
    %568 = vmatprep.subr.mxu0 %v294
    %569 = vmatpush1.msra.mxu0 %v293
    %570 = vmatprep.subr.mxu0 %v296
    %571 = vmatpush1.msra.mxu0 %v295
    %572 = vmatprep.subr.mxu0 %v298
    %573 = vmatpush1.msra.mxu0 %v297
    %574 = vmatprep.subr.mxu0 %v300
    %575 = vmatpush1.msra.mxu0 %v299
    %576 = vmatprep.subr.mxu0 %v302
    %577 = vmatpush1.msra.mxu0 %v301
    %578 = vmatprep.subr.mxu0 %v304
    %579 = vmatpush1.msra.mxu0 %v303
    %580 = vmatprep.subr.mxu0 %v306
    %581 = vmatpush1.msra.mxu0 %v305
    %582 = vmatprep.subr.mxu0 %v308
    %583 = vmatpush1.msra.mxu0 %v307
    %584 = vmatprep.subr.mxu0 %v310
    %585 = vmatpush1.msra.mxu0 %v309
    %586 = vmatprep.subr.mxu0 %v312
    %587 = vmatpush1.msra.mxu0 %v311
    %588 = vmatprep.subr.mxu0 %v314
    %589 = vmatpush1.msra.mxu0 %v313
    %590 = vmatprep.subr.mxu0 0.0
    %591 = vmatpush1.msra.mxu0 0.0
    %592 = vmatprep.subr.mxu0 0.0
    %593 = vmatpush1.msra.mxu0 0.0
    %594 = vmatprep.subr.mxu0 0.0
    %595 = vmatpush1.msra.mxu0 0.0
    %596 = vmatprep.mubr.f32.mxu0 %v317
    %597 = vmatmul.mubr.f32.gmra.mrb[0].mxu0 %v63
    %v598 = vpop.f32.mrb[0].mxu0
    %v599 = vadd.f32 %v528, %v598
    %v600 = vpop.f32.mrb[0].mxu0
    %v601 = vadd.f32 %v530, %v600
    %602 = vdwg.mxu0
    %603 = vst [vmem:[#allocation2] sm:$0xff] %v599
    %604 = vst [vmem:[#allocation2 + $0x8] sm:$0xff] %v601
    %v605 = vld [vmem:[#allocation2] sm:$0xff]
    %v606 = vld [vmem:[#allocation2 + $0x8] sm:$0xff]
    %v607 = vld [vmem:[#allocation8] sm:$0xff]
    %v608 = vld [vmem:[#allocation8 + $0x8] sm:$0xff]
    %v609 = vld [vmem:[#allocation8 + $0x10] sm:$0xff]
    %v610 = vld [vmem:[#allocation8 + $0x18] sm:$0xff]
    %v611 = vld [vmem:[#allocation8 + $0x20] sm:$0xff]
    %v612 = vld [vmem:[#allocation8 + $0x28] sm:$0xff]
    %v613 = vld [vmem:[#allocation8 + $0x30] sm:$0xff]
    %v614 = vld [vmem:[#allocation8 + $0x38] sm:$0xff]
    %v615 = vld [vmem:[#allocation8 + $0x40] sm:$0xff]
    %v616 = vld [vmem:[#allocation8 + $0x48] sm:$0xff]
    %v617 = vld [vmem:[#allocation8 + $0x50] sm:$0xff]
    %v618 = vld [vmem:[#allocation8 + $0x58] sm:$0xff]
    %v619 = vld [vmem:[#allocation8 + $0x60] sm:$0xff]
    %v620 = vld [vmem:[#allocation8 + $0x68] sm:$0xff]
    %v621 = vld [vmem:[#allocation8 + $0x70] sm:$0xff]
    %v622 = vld [vmem:[#allocation8 + $0x78] sm:$0xff]
    %v623 = vld [vmem:[#allocation8 + $0x80] sm:$0xff]
    %v624 = vld [vmem:[#allocation8 + $0x88] sm:$0xff]
    %v625 = vld [vmem:[#allocation8 + $0x90] sm:$0xff]
    %v626 = vld [vmem:[#allocation8 + $0x98] sm:$0xff]
    %v627 = vld [vmem:[#allocation8 + $0xa0] sm:$0xff]
    %v628 = vld [vmem:[#allocation8 + $0xa8] sm:$0xff]
    %v629 = vld [vmem:[#allocation8 + $0xb0] sm:$0xff]
    %v630 = vld [vmem:[#allocation8 + $0xb8] sm:$0xff]
    %v631 = vld [vmem:[#allocation8 + $0xc0] sm:$0xff]
    %v632 = vld [vmem:[#allocation8 + $0xc8] sm:$0xff]
    %v633 = vld [vmem:[#allocation8 + $0xd0] sm:$0xff]
    %v634 = vld [vmem:[#allocation8 + $0xd8] sm:$0xff]
    %v635 = vld [vmem:[#allocation8 + $0xe0] sm:$0xff]
    %v636 = vld [vmem:[#allocation8 + $0xe8] sm:$0xff]
    %v637 = vld [vmem:[#allocation8 + $0xf0] sm:$0xff]
    %v638 = vld [vmem:[#allocation8 + $0xf8] sm:$0xff]
    %v639 = vld [vmem:[%s3] sm:$0x1]
    %v641 = vlaneseq
    %v642 = vshrl.u32 %v641, 7
    %v643 = vsub.s32 0, %v642
    %v644 = vrot.slane %v639, %v643
    %646 = vmatprep.subr.mxu0 0.0
    %647 = vmatpush1.msra.mxu0 %v607
    %648 = vmatprep.subr.mxu0 0.0
    %649 = vmatpush1.msra.mxu0 %v608
    %650 = vmatprep.subr.mxu0 0.0
    %651 = vmatpush1.msra.mxu0 %v609
    %652 = vmatprep.subr.mxu0 0.0
    %653 = vmatpush1.msra.mxu0 %v610
    %654 = vmatprep.subr.mxu0 0.0
    %655 = vmatpush1.msra.mxu0 %v611
    %656 = vmatprep.subr.mxu0 0.0
    %657 = vmatpush1.msra.mxu0 %v612
    %658 = vmatprep.subr.mxu0 0.0
    %659 = vmatpush1.msra.mxu0 %v613
    %660 = vmatprep.subr.mxu0 0.0
    %661 = vmatpush1.msra.mxu0 %v614
    %662 = vmatprep.subr.mxu0 0.0
    %663 = vmatpush1.msra.mxu0 %v615
    %664 = vmatprep.subr.mxu0 0.0
    %665 = vmatpush1.msra.mxu0 %v616
    %666 = vmatprep.subr.mxu0 0.0
    %667 = vmatpush1.msra.mxu0 %v617
    %668 = vmatprep.subr.mxu0 0.0
    %669 = vmatpush1.msra.mxu0 %v618
    %670 = vmatprep.subr.mxu0 0.0
    %671 = vmatpush1.msra.mxu0 %v619
    %672 = vmatprep.subr.mxu0 0.0
    %673 = vmatpush1.msra.mxu0 %v620
    %674 = vmatprep.subr.mxu0 0.0
    %675 = vmatpush1.msra.mxu0 %v621
    %676 = vmatprep.subr.mxu0 0.0
    %677 = vmatpush1.msra.mxu0 %v622
    %678 = vmatprep.subr.mxu0 0.0
    %679 = vmatpush1.msra.mxu0 %v623
    %680 = vmatprep.subr.mxu0 0.0
    %681 = vmatpush1.msra.mxu0 %v624
    %682 = vmatprep.subr.mxu0 0.0
    %683 = vmatpush1.msra.mxu0 %v625
    %684 = vmatprep.subr.mxu0 0.0
    %685 = vmatpush1.msra.mxu0 %v626
    %686 = vmatprep.subr.mxu0 0.0
    %687 = vmatpush1.msra.mxu0 %v627
    %688 = vmatprep.subr.mxu0 0.0
    %689 = vmatpush1.msra.mxu0 %v628
    %690 = vmatprep.subr.mxu0 0.0
    %691 = vmatpush1.msra.mxu0 %v629
    %692 = vmatprep.subr.mxu0 0.0
    %693 = vmatpush1.msra.mxu0 %v630
    %694 = vmatprep.subr.mxu0 0.0
    %695 = vmatpush1.msra.mxu0 %v631
    %696 = vmatprep.subr.mxu0 0.0
    %697 = vmatpush1.msra.mxu0 %v632
    %698 = vmatprep.subr.mxu0 0.0
    %699 = vmatpush1.msra.mxu0 %v633
    %700 = vmatprep.subr.mxu0 0.0
    %701 = vmatpush1.msra.mxu0 %v634
    %702 = vmatprep.subr.mxu0 0.0
    %703 = vmatpush1.msra.mxu0 %v635
    %704 = vmatprep.subr.mxu0 0.0
    %705 = vmatpush1.msra.mxu0 %v636
    %706 = vmatprep.subr.mxu0 0.0
    %707 = vmatpush1.msra.mxu0 %v637
    %708 = vmatprep.subr.mxu0 0.0
    %709 = vmatpush1.msra.mxu0 %v638
    %710 = vmatprep.mubr.f32.mxu0 %v606
    %711 = vmatmul.mubr.f32.gmra.mrb[0].mxu0 %v605
    %v712 = vpop.f32.mrb[0].mxu0
    %v713 = vadd.f32 %v644, %v712
    %v714 = vpop.f32.mrb[0].mxu0
    %715 = vdwg.mxu0
    %716 = vst [vmem:[#allocation9] sm:$0xff] %v713
    // Predicated region
    $region30: #{tpu_custom_call.1} parent=1 // pred_check
      _
    $region31: #{tpu_custom_call.1} parent=1 // pred_check_branch
      %718 = sbr.rel (0) target = $region33
    $region32: #{tpu_custom_call.1} parent=1 // pred_region
      %s720 = ssub.s32 128, 128
      %721 = vsyncadd [#allocation5], %s720
      %s723 = sshll.u32 [#allocation9], 4
      %s724 = int_to_ptr.vmem [resolvable:$true] %s723
      %726 = dma.vmem_to_hbm [thread:$0]  %s724, 128, %s4, [#allocation5]
    $region33: #{tpu_custom_call.1} parent=1 // pred_fallthru
      _
    // Predicated region
    $region34: #{tpu_custom_call.1} parent=1 // pred_check
      _
    $region35: #{tpu_custom_call.1} parent=1 // pred_check_branch
      %728 = sbr.rel (0) target = $region37
    $region36: #{tpu_custom_call.1} parent=1 // pred_region
      %729 = dma.done [#allocation5], 128
    $region37: #{tpu_custom_call.1} parent=1 // pred_fallthru
      _
    %730 = vsyncpa [#allocation4], 1
    %731 = vsyncpa [#allocation7], 1
    %732 = vsyncpa [#allocation5], 1

</llo_original>
